<compile_context>
chip_gen: v7x
topology: tpu7x:2x2x1
jax: 0.10.0
libtpu: 0.0.40
codegen_flags: <defaults>
</compile_context>

<pallas_src>
import jax
import jax.numpy as jnp
from jax.experimental import pallas as pl
from jax.experimental.pallas import tpu as pltpu


def _round_up(x, m):
    return ((x + m - 1) // m) * m


def _cdiv(a, b):
    return -(-a // b)


def _vmem_capacity_bytes():
    try:
        return int(pltpu.get_tpu_info().vmem_capacity_bytes)
    except Exception:
        return 64 << 20  # conservative fallback (v7x per-TC VMEM)


# ---------------------------------------------------------------------------
# Kernel 1: one-shot K/V projection.
#   K^T = (M @ Wk.T).T   -> (D_pad, M_pad)   (transpose paid once, not per tile)
#   V   =  M @ Wv.T      -> (M_pad, D_pad)
# ---------------------------------------------------------------------------
def _kv_project_kernel(m_ref, wk_ref, wv_ref, kt_ref, v_ref):
    m = m_ref[...]
    k = jnp.dot(m, wk_ref[...], preferred_element_type=jnp.float32)
    kt_ref[...] = k.T.astype(kt_ref.dtype)
    v_ref[...] = jnp.dot(
        m, wv_ref[...], preferred_element_type=jnp.float32).astype(v_ref.dtype)


# ---------------------------------------------------------------------------
# Kernel 2: memory attention over a (TM, D_pad) token tile, flash-style
# online softmax over memory tiles (grid axis 1, "arbitrary").
# ---------------------------------------------------------------------------
def _attn_kernel(h_ref, kt_ref, v_ref, bias_ref, o_ref, m_sc, l_sc, acc_sc):
    ki = pl.program_id(1)

    @pl.when(ki == 0)
    def _init():
        m_sc[...] = jnp.full_like(m_sc, -jnp.inf)
        l_sc[...] = jnp.zeros_like(l_sc)
        acc_sc[...] = jnp.zeros_like(acc_sc)

    # Scores for this (token tile, memory tile): plain MXU matmul against the
    # pre-transposed K; f32 accumulation.
    s = jnp.dot(h_ref[...], kt_ref[...],
                preferred_element_type=jnp.float32)            # (TM, TMEM)
    s = s + bias_ref[0:1, :]                                   # mask padded slots

    # Online softmax update (all intermediates f32).
    m_prev = m_sc[...]
    m_new = jnp.maximum(m_prev, jnp.max(s, axis=-1, keepdims=True))
    alpha = jnp.exp(m_prev - m_new)                            # (TM, 1)
    p = jnp.exp(s - m_new)                                     # (TM, TMEM)
    l_sc[...] = alpha * l_sc[...] + jnp.sum(p, axis=-1, keepdims=True)
    acc_sc[...] = alpha * acc_sc[...] + jnp.dot(
        p.astype(v_ref.dtype), v_ref[...],
        preferred_element_type=jnp.float32)                    # (TM, D_pad)
    m_sc[...] = m_new

    @pl.when(ki == pl.num_programs(1) - 1)
    def _finalize():
        # Exact reciprocal to stay inside tight f32 tolerances; approx=True is
        # a free EUP win once a looser tolerance is acceptable.
        inv = pl.reciprocal(l_sc[...], approx=False)
        # Re-load H for the residual instead of keeping it live across the
        # matmuls/softmax (shorter vreg live range).
        o_ref[...] = (h_ref[...].astype(jnp.float32)
                      + acc_sc[...] * inv).astype(o_ref.dtype)


def memory_module_forward(H, M, Wk, Wv, *, lane=128):
    """H: (batch, seq, dim); M: (memory_size, dim);
    Wk/Wv: (dim, dim) PyTorch nn.Linear weights (out_features, in_features)."""
    B, S, D = H.shape
    Msz = M.shape[0]
    T = B * S
    dtype = H.dtype
    itemsize = jnp.dtype(dtype).itemsize
    sublane = 16 if itemsize == 2 else 8

    D_pad = _round_up(D, lane)

    vmem_cap = _vmem_capacity_bytes()
    budget = int(0.75 * vmem_cap)          # generation-aware per-core budget

    # -- memory-axis tiling --------------------------------------------------
    M_lane = _round_up(Msz, lane)
    kv_resident = 2 * M_lane * D_pad * itemsize
    if kv_resident <= budget // 3:
        TMEM, n_kv_buf = M_lane, 1          # K/V fully resident, single-buffered
    else:
        TMEM = max(lane,
                   ((budget // 3) // (2 * 2 * D_pad * itemsize)) // lane * lane)
        TMEM = min(TMEM, M_lane)
        n_kv_buf = 2                        # streamed & double-buffered
    M_pad = _round_up(Msz, TMEM)
    n_mem = M_pad // TMEM

    # -- token-axis tiling ---------------------------------------------------
    def attn_tile_bytes(tm):
        io = itemsize * 4 * tm * D_pad                        # H in + out, dbl-buffered
        kv = n_kv_buf * (2 * TMEM * D_pad * itemsize + 8 * TMEM * 4)
        scratch = 4 * (tm * D_pad + 2 * tm * lane)            # acc + m/l (lane-padded)
        live = 4 * 2 * tm * TMEM                              # s / p f32 intermediates
        return io + kv + scratch + live

    TM_max = 1024
    while TM_max > sublane and attn_tile_bytes(TM_max) > budget:
        TM_max = max(sublane, (TM_max // 2) // sublane * sublane)

    # >=2 token tiles whenever possible so both v7x TensorCores get work; tiles
    # are balanced (minimal padding) rather than rounding T up to a tile size.
    min_tiles = 2 if T >= 2 * sublane else 1
    n_tok = max(_cdiv(T, TM_max), min_tiles)
    TM = _round_up(_cdiv(T, n_tok), sublane)
    n_tok = _cdiv(T, TM)
    T_pad = n_tok * TM

    # -- wrapper-side layout plumbing: lane-dense, zero-padded operands ------
    h2d = jnp.pad(H.reshape(T, D), ((0, T_pad - T), (0, D_pad - D)))
    m_p = jnp.pad(M, ((0, M_pad - Msz), (0, D_pad - D))).astype(dtype)
    wk_t = jnp.pad(Wk.T, ((0, D_pad - D), (0, D_pad - D))).astype(dtype)
    wv_t = jnp.pad(Wv.T, ((0, D_pad - D), (0, D_pad - D))).astype(dtype)

    # Additive bias masking padded memory slots (kept in f32; -1e30 would
    # overflow in bf16).
    bias_row = jnp.where(jnp.arange(M_pad) < Msz, 0.0, -1e30).astype(jnp.float32)
    bias = jnp.broadcast_to(bias_row[None, :], (8, M_pad))

    # -- 1) K/V projection (one-shot) ----------------------------------------
    proj_bytes = (itemsize * (3 * M_pad * D_pad + 2 * D_pad * D_pad)
                  + 4 * 2 * M_pad * D_pad)
    if proj_bytes <= budget:
        kt_p, v_p = pl.pallas_call(
            _kv_project_kernel,
            out_shape=(jax.ShapeDtypeStruct((D_pad, M_pad), dtype),
                       jax.ShapeDtypeStruct((M_pad, D_pad), dtype)),
            in_specs=[pl.BlockSpec((M_pad, D_pad), lambda: (0, 0)),
                      pl.BlockSpec((D_pad, D_pad), lambda: (0, 0)),
                      pl.BlockSpec((D_pad, D_pad), lambda: (0, 0))],
            out_specs=(pl.BlockSpec((D_pad, M_pad), lambda: (0, 0)),
                       pl.BlockSpec((M_pad, D_pad), lambda: (0, 0))),
            compiler_params=pltpu.CompilerParams(
                vmem_limit_bytes=int(min(max(proj_bytes + (4 << 20), 16 << 20),
                                         0.95 * vmem_cap))),
        )(m_p, wk_t, wv_t)
    else:
        # Very large dim*memory_size: a one-shot unblocked Pallas projection
        # would overflow VMEM; let XLA tile this single matmul instead.
        k_f = jnp.dot(m_p, wk_t, preferred_element_type=jnp.float32)
        kt_p = k_f.T.astype(dtype)
        v_p = jnp.dot(m_p, wv_t,
                      preferred_element_type=jnp.float32).astype(dtype)

    # -- 2) tiled memory attention -------------------------------------------
    kv_mode = {"pipeline_mode": pl.Buffered(1)} if n_mem == 1 else {}
    in_specs = [
        pl.BlockSpec((TM, D_pad), lambda i, k: (i, 0)),
        pl.BlockSpec((D_pad, TMEM), lambda i, k: (0, k), **kv_mode),
        pl.BlockSpec((TMEM, D_pad), lambda i, k: (k, 0), **kv_mode),
        pl.BlockSpec((8, TMEM), lambda i, k: (0, k), **kv_mode),
    ]

    cost = pl.CostEstimate(
        flops=4 * T_pad * M_pad * D_pad,                   # H@K.T and P@V
        transcendentals=T_pad * (M_pad + n_mem),           # exp (+ alpha rescale)
        bytes_accessed=itemsize * (2 * T_pad * D_pad
                                   + 2 * M_pad * D_pad * (n_tok if n_mem > 1 else 1)),
    )

    out_pad = pl.pallas_call(
        _attn_kernel,
        out_shape=jax.ShapeDtypeStruct((T_pad, D_pad), dtype),
        grid=(n_tok, n_mem),
        in_specs=in_specs,
        out_specs=pl.BlockSpec((TM, D_pad), lambda i, k: (i, 0)),
        scratch_shapes=[pltpu.VMEM((TM, 1), jnp.float32),      # running max
                        pltpu.VMEM((TM, 1), jnp.float32),      # running denom
                        pltpu.VMEM((TM, D_pad), jnp.float32)], # running acc
        compiler_params=pltpu.CompilerParams(
            dimension_semantics=("parallel", "arbitrary"),
            vmem_limit_bytes=int(min(max(attn_tile_bytes(TM) + (4 << 20), 32 << 20),
                                     0.95 * vmem_cap)),
        ),
        cost_estimate=cost,
    )(h2d, kt_p, v_p, bias)

    return out_pad[:T, :D].reshape(B, S, D)


def _reference(H, M, Wk, Wv):
    K = M @ Wk.T
    V = M @ Wv.T
    s = jnp.einsum("bsd,md->bsm", H, K)
    w = jax.nn.softmax(s, axis=-1)
    A = jnp.einsum("bsm,md->bsd", w, V)
    return H + A


if __name__ == "__main__":
    batch, seq, dim, memory_size = 2, 8, 32, 16

    key = jax.random.PRNGKey(0)
    k1, k2, k3, k4 = jax.random.split(key, 4)
    H = jax.random.normal(k1, (batch, seq, dim), dtype=jnp.float32)
    M = jax.random.normal(k2, (memory_size, dim), dtype=jnp.float32)
    Wk = jax.random.normal(k3, (dim, dim), dtype=jnp.float32) * (1.0 / dim ** 0.5)
    Wv = jax.random.normal(k4, (dim, dim), dtype=jnp.float32) * (1.0 / dim ** 0.5)

    out = memory_module_forward(H, M, Wk, Wv)
    jax.block_until_ready(out)

    ref = _reference(H, M, Wk, Wv)
    assert out.shape == (batch, seq, dim)
    assert jnp.allclose(out, ref, atol=1e-4, rtol=1e-4), "mismatch vs reference"

    print("KERNEL_OK")
</pallas_src>

<mosaic_0001>
module attributes {stable_mosaic.version = 11 : i64} {
  func.func @_kv_project_kernel(%arg0: memref<128x128xf32, #tpu.memory_space<vmem>>, %arg1: memref<128x128xf32, #tpu.memory_space<vmem>>, %arg2: memref<128x128xf32, #tpu.memory_space<vmem>>, %arg3: memref<128x128xf32, #tpu.memory_space<vmem>>, %arg4: memref<128x128xf32, #tpu.memory_space<vmem>>) attributes {dimension_semantics = [], scalar_prefetch = 0 : i64, scratch_operands = 0 : i64, tpu.core_type = #tpu.core_type<tc>} {
    %c0 = arith.constant 0 : index
    %c0_0 = arith.constant 0 : index
    %0 = vector.load %arg0[%c0, %c0_0] : memref<128x128xf32, #tpu.memory_space<vmem>>, vector<128x128xf32>
    %c0_1 = arith.constant 0 : index
    %c0_2 = arith.constant 0 : index
    %1 = vector.load %arg1[%c0_1, %c0_2] : memref<128x128xf32, #tpu.memory_space<vmem>>, vector<128x128xf32>
    %cst = arith.constant dense<0.000000e+00> : vector<128x128xf32>
    %2 = tpu.matmul %0, %1, %cst {dimension_numbers = #tpu.dot_dimension_numbers<[1], [0], [0], [1], [0, 0, 1, 1], [], []>} : vector<128x128xf32>, vector<128x128xf32>, vector<128x128xf32> -> vector<128x128xf32>
    %3 = tpu.transpose %2, [1, 0] : vector<128x128xf32> -> vector<128x128xf32>
    %c0_3 = arith.constant 0 : index
    %c0_4 = arith.constant 0 : index
    %4 = vector.load %arg3[%c0_3, %c0_4] : memref<128x128xf32, #tpu.memory_space<vmem>>, vector<128x128xf32>
    tpu.vector_store %arg3[%c0_3, %c0_4], %3 {strides = array<i32>} : memref<128x128xf32, #tpu.memory_space<vmem>>, vector<128x128xf32>,
    %c0_5 = arith.constant 0 : index
    %c0_6 = arith.constant 0 : index
    %5 = vector.load %arg2[%c0_5, %c0_6] : memref<128x128xf32, #tpu.memory_space<vmem>>, vector<128x128xf32>
    %cst_7 = arith.constant dense<0.000000e+00> : vector<128x128xf32>
    %6 = tpu.matmul %0, %5, %cst_7 {dimension_numbers = #tpu.dot_dimension_numbers<[1], [0], [0], [1], [0, 0, 1, 1], [], []>} : vector<128x128xf32>, vector<128x128xf32>, vector<128x128xf32> -> vector<128x128xf32>
    %c0_8 = arith.constant 0 : index
    %c0_9 = arith.constant 0 : index
    %7 = vector.load %arg4[%c0_8, %c0_9] : memref<128x128xf32, #tpu.memory_space<vmem>>, vector<128x128xf32>
    tpu.vector_store %arg4[%c0_8, %c0_9], %6 {strides = array<i32>} : memref<128x128xf32, #tpu.memory_space<vmem>>, vector<128x128xf32>,
    return
  }
}

</mosaic_0001>

<llo_original>
// kernel: tpu_custom_call.1
$region0: #{tpu_custom_call.1}
  #allocation0 [shape = 'u32[]', space=smem, size = 0x4, offset = 0x4, fixed_abs, tag = 'smem constant byte address 0x4 - core index']
  #allocation1 [shape = 'u32[144,128]{1,0:T(1,128)}', space=vmem, size = 0x12000, scoped, tag = 'internal scratch']
  %s0 = inlined_call_operand.hbm [shape: f32[128,128], index: 0, kind: input, shape index: {}]
  %s1 = inlined_call_operand.hbm [shape: f32[128,128], index: 1, kind: input, shape index: {}]
  %s2 = inlined_call_operand.hbm [shape: f32[128,128], index: 2, kind: input, shape index: {}]
  %s3 = inlined_call_operand.hbm [shape: f32[128,128], index: 3, kind: output, shape index: {0}]
  %s4 = inlined_call_operand.hbm [shape: f32[128,128], index: 4, kind: output, shape index: {1}]
  %5 = xla_tuple %s3, %s4
  %s6 = sld [smem:[#allocation0]]
  $region42: #{tpu_custom_call.1} parent=0
    _
  %s8 = ssub.s32 1, %s6
  %s9 = scalar_select 0, %s8, %s6
  $region1: #{tpu_custom_call.1} parent=0
    #allocation2 [shape = 'u8[65536]{0}', space=vmem, size = 0x10000, scoped, tag = 'input window, operand 0, single buffered']
    #allocation3 [shape = 's32[1]{0}', space=sflag, size = 0x4, scoped, tag = 'scoped memory for tpu_custom_call.1']
    #allocation4 [shape = 's32[1]{0}', space=sflag, size = 0x4, scoped, tag = 'scoped memory for tpu_custom_call.1']
    #allocation5 [shape = 'u8[65536]{0}', space=vmem, size = 0x10000, scoped, tag = 'input window, operand 1, single buffered']
    #allocation6 [shape = 's32[1]{0}', space=sflag, size = 0x4, scoped, tag = 'scoped memory for tpu_custom_call.1']
    #allocation7 [shape = 'u8[65536]{0}', space=vmem, size = 0x10000, scoped, tag = 'input window, operand 2, single buffered']
    #allocation8 [shape = 'u8[65536]{0}', space=vmem, size = 0x10000, scoped, tag = 'output window, operand 0, single buffered']
    #allocation9 [shape = 'u8[65536]{0}', space=vmem, size = 0x10000, scoped, tag = 'output window, operand 1, single buffered']
    #allocation10 [shape = 's32[1]{0}', space=sflag, size = 0x4, scoped, tag = 'scoped memory for tpu_custom_call.1']
    %10 = vsyncpa [#allocation3], 0
    %11 = vsyncpa [#allocation6], 0
    %12 = vsyncpa [#allocation4], 0
    %13 = vsyncpa [#allocation10], 0
    // Predicated region
    $region2: #{tpu_custom_call.1} parent=1 // pred_check
      _
    $region3: #{tpu_custom_call.1} parent=1 // pred_check_branch
      %15 = sbr.rel (0) target = $region5
    $region4: #{tpu_custom_call.1} parent=1 // pred_region
      %s17 = ssub.s32 2048, 2048
      %18 = vsyncadd [#allocation3], %s17
      %s19 = sshll.u32 [#allocation2], 4
      %s20 = int_to_ptr.vmem [resolvable:$true] %s19
      %25 = dma.hbm_to_vmem [thread:$0]  %s0, 2048, %s20, [#allocation3], 128, 128, 8
    $region5: #{tpu_custom_call.1} parent=1 // pred_fallthru
      _
    // Predicated region
    $region6: #{tpu_custom_call.1} parent=1 // pred_check
      _
    $region7: #{tpu_custom_call.1} parent=1 // pred_check_branch
      %27 = sbr.rel (0) target = $region9
    $region8: #{tpu_custom_call.1} parent=1 // pred_region
      %s29 = ssub.s32 2048, 2048
      %30 = vsyncadd [#allocation6], %s29
      %s31 = sshll.u32 [#allocation5], 4
      %s32 = int_to_ptr.vmem [resolvable:$true] %s31
      %37 = dma.hbm_to_vmem [thread:$0]  %s1, 2048, %s32, [#allocation6], 128, 128, 8
    $region9: #{tpu_custom_call.1} parent=1 // pred_fallthru
      _
    // Predicated region
    $region10: #{tpu_custom_call.1} parent=1 // pred_check
      _
    $region11: #{tpu_custom_call.1} parent=1 // pred_check_branch
      %39 = sbr.rel (0) target = $region13
    $region12: #{tpu_custom_call.1} parent=1 // pred_region
      %s41 = ssub.s32 2048, 2048
      %42 = vsyncadd [#allocation6], %s41
      %s43 = sshll.u32 [#allocation7], 4
      %s44 = int_to_ptr.vmem [resolvable:$true] %s43
      %49 = dma.hbm_to_vmem [thread:$0]  %s2, 2048, %s44, [#allocation6], 128, 128, 8
    $region13: #{tpu_custom_call.1} parent=1 // pred_fallthru
      _
    // Predicated region
    $region14: #{tpu_custom_call.1} parent=1 // pred_check
      _
    $region15: #{tpu_custom_call.1} parent=1 // pred_check_branch
      %51 = sbr.rel (0) target = $region17
    $region16: #{tpu_custom_call.1} parent=1 // pred_region
      %52 = dma.done [#allocation3], 2048
    $region17: #{tpu_custom_call.1} parent=1 // pred_fallthru
      _
    // Predicated region
    $region18: #{tpu_custom_call.1} parent=1 // pred_check
      _
    $region19: #{tpu_custom_call.1} parent=1 // pred_check_branch
      %54 = sbr.rel (0) target = $region21
    $region20: #{tpu_custom_call.1} parent=1 // pred_region
      %55 = dma.done [#allocation6], 2048
    $region21: #{tpu_custom_call.1} parent=1 // pred_fallthru
      _
    // Predicated region
    $region22: #{tpu_custom_call.1} parent=1 // pred_check
      _
    $region23: #{tpu_custom_call.1} parent=1 // pred_check_branch
      %57 = sbr.rel (0) target = $region25
    $region24: #{tpu_custom_call.1} parent=1 // pred_region
      %58 = dma.done [#allocation6], 2048
    $region25: #{tpu_custom_call.1} parent=1 // pred_fallthru
      _
    %v59 = vld [vmem:[#allocation2] sm:$0xff]
    %v60 = vld [vmem:[#allocation2 + $0x8] sm:$0xff]
    %v61 = vld [vmem:[#allocation2 + $0x10] sm:$0xff]
    %v62 = vld [vmem:[#allocation2 + $0x18] sm:$0xff]
    %v63 = vld [vmem:[#allocation2 + $0x20] sm:$0xff]
    %v64 = vld [vmem:[#allocation2 + $0x28] sm:$0xff]
    %v65 = vld [vmem:[#allocation2 + $0x30] sm:$0xff]
    %v66 = vld [vmem:[#allocation2 + $0x38] sm:$0xff]
    %v67 = vld [vmem:[#allocation2 + $0x40] sm:$0xff]
    %v68 = vld [vmem:[#allocation2 + $0x48] sm:$0xff]
    %v69 = vld [vmem:[#allocation2 + $0x50] sm:$0xff]
    %v70 = vld [vmem:[#allocation2 + $0x58] sm:$0xff]
    %v71 = vld [vmem:[#allocation2 + $0x60] sm:$0xff]
    %v72 = vld [vmem:[#allocation2 + $0x68] sm:$0xff]
    %v73 = vld [vmem:[#allocation2 + $0x70] sm:$0xff]
    %v74 = vld [vmem:[#allocation2 + $0x78] sm:$0xff]
    %v75 = vld [vmem:[#allocation5] sm:$0xff]
    %v76 = vld [vmem:[#allocation5 + $0x8] sm:$0xff]
    %v77 = vld [vmem:[#allocation5 + $0x10] sm:$0xff]
    %v78 = vld [vmem:[#allocation5 + $0x18] sm:$0xff]
    %v79 = vld [vmem:[#allocation5 + $0x20] sm:$0xff]
    %v80 = vld [vmem:[#allocation5 + $0x28] sm:$0xff]
    %v81 = vld [vmem:[#allocation5 + $0x30] sm:$0xff]
    %v82 = vld [vmem:[#allocation5 + $0x38] sm:$0xff]
    %v83 = vld [vmem:[#allocation5 + $0x40] sm:$0xff]
    %v84 = vld [vmem:[#allocation5 + $0x48] sm:$0xff]
    %v85 = vld [vmem:[#allocation5 + $0x50] sm:$0xff]
    %v86 = vld [vmem:[#allocation5 + $0x58] sm:$0xff]
    %v87 = vld [vmem:[#allocation5 + $0x60] sm:$0xff]
    %v88 = vld [vmem:[#allocation5 + $0x68] sm:$0xff]
    %v89 = vld [vmem:[#allocation5 + $0x70] sm:$0xff]
    %v90 = vld [vmem:[#allocation5 + $0x78] sm:$0xff]
    %91 = vmatprep.subr.mxu0 0.0
    %92 = vmatpush1.msra.mxu0 %v75
    %93 = vmatprep.subr.mxu0 0.0
    %94 = vmatpush1.msra.mxu0 %v76
    %95 = vmatprep.subr.mxu0 0.0
    %96 = vmatpush1.msra.mxu0 %v77
    %97 = vmatprep.subr.mxu0 0.0
    %98 = vmatpush1.msra.mxu0 %v78
    %99 = vmatprep.subr.mxu0 0.0
    %100 = vmatpush1.msra.mxu0 %v79
    %101 = vmatprep.subr.mxu0 0.0
    %102 = vmatpush1.msra.mxu0 %v80
    %103 = vmatprep.subr.mxu0 0.0
    %104 = vmatpush1.msra.mxu0 %v81
    %105 = vmatprep.subr.mxu0 0.0
    %106 = vmatpush1.msra.mxu0 %v82
    %107 = vmatprep.subr.mxu0 0.0
    %108 = vmatpush1.msra.mxu0 %v83
    %109 = vmatprep.subr.mxu0 0.0
    %110 = vmatpush1.msra.mxu0 %v84
    %111 = vmatprep.subr.mxu0 0.0
    %112 = vmatpush1.msra.mxu0 %v85
    %113 = vmatprep.subr.mxu0 0.0
    %114 = vmatpush1.msra.mxu0 %v86
    %115 = vmatprep.subr.mxu0 0.0
    %116 = vmatpush1.msra.mxu0 %v87
    %117 = vmatprep.subr.mxu0 0.0
    %118 = vmatpush1.msra.mxu0 %v88
    %119 = vmatprep.subr.mxu0 0.0
    %120 = vmatpush1.msra.mxu0 %v89
    %121 = vmatprep.subr.mxu0 0.0
    %122 = vmatpush1.msra.mxu0 %v90
    %123 = vmatprep.subr.mxu0 0.0
    %124 = vmatpush1.msra.mxu0 0.0
    %125 = vmatprep.subr.mxu0 0.0
    %126 = vmatpush1.msra.mxu0 0.0
    %127 = vmatprep.subr.mxu0 0.0
    %128 = vmatpush1.msra.mxu0 0.0
    %129 = vmatprep.subr.mxu0 0.0
    %130 = vmatpush1.msra.mxu0 0.0
    %131 = vmatprep.subr.mxu0 0.0
    %132 = vmatpush1.msra.mxu0 0.0
    %133 = vmatprep.subr.mxu0 0.0
    %134 = vmatpush1.msra.mxu0 0.0
    %135 = vmatprep.subr.mxu0 0.0
    %136 = vmatpush1.msra.mxu0 0.0
    %137 = vmatprep.subr.mxu0 0.0
    %138 = vmatpush1.msra.mxu0 0.0
    %139 = vmatprep.subr.mxu0 0.0
    %140 = vmatpush1.msra.mxu0 0.0
    %141 = vmatprep.subr.mxu0 0.0
    %142 = vmatpush1.msra.mxu0 0.0
    %143 = vmatprep.subr.mxu0 0.0
    %144 = vmatpush1.msra.mxu0 0.0
    %145 = vmatprep.subr.mxu0 0.0
    %146 = vmatpush1.msra.mxu0 0.0
    %147 = vmatprep.subr.mxu0 0.0
    %148 = vmatpush1.msra.mxu0 0.0
    %149 = vmatprep.subr.mxu0 0.0
    %150 = vmatpush1.msra.mxu0 0.0
    %151 = vmatprep.subr.mxu0 0.0
    %152 = vmatpush1.msra.mxu0 0.0
    %153 = vmatprep.subr.mxu0 0.0
    %154 = vmatpush1.msra.mxu0 0.0
    %155 = vmatprep.mubr.f32.mxu0 0.0
    %156 = vmatmul.mubr.f32.gmra.mrb[0].mxu0 %v59
    %v157 = vpop.f32.mrb[0].mxu0
    %v158 = vadd.f32 0.0, %v157
    %v159 = vpop.f32.mrb[0].mxu0
    %160 = vmatprep.mubr.f32.mxu0 0.0
    %161 = vmatmul.mubr.f32.gmra.mrb[0].mxu0 %v60
    %v162 = vpop.f32.mrb[0].mxu0
    %v163 = vadd.f32 0.0, %v162
    %v164 = vpop.f32.mrb[0].mxu0
    %165 = vmatprep.mubr.f32.mxu0 0.0
    %166 = vmatmul.mubr.f32.gmra.mrb[0].mxu0 %v61
    %v167 = vpop.f32.mrb[0].mxu0
    %v168 = vadd.f32 0.0, %v167
    %v169 = vpop.f32.mrb[0].mxu0
    %170 = vmatprep.mubr.f32.mxu0 0.0
    %171 = vmatmul.mubr.f32.gmra.mrb[0].mxu0 %v62
    %v172 = vpop.f32.mrb[0].mxu0
    %v173 = vadd.f32 0.0, %v172
    %v174 = vpop.f32.mrb[0].mxu0
    %175 = vmatprep.mubr.f32.mxu0 0.0
    %176 = vmatmul.mubr.f32.gmra.mrb[0].mxu0 %v63
    %v177 = vpop.f32.mrb[0].mxu0
    %v178 = vadd.f32 0.0, %v177
    %v179 = vpop.f32.mrb[0].mxu0
    %180 = vmatprep.mubr.f32.mxu0 0.0
    %181 = vmatmul.mubr.f32.gmra.mrb[0].mxu0 %v64
    %v182 = vpop.f32.mrb[0].mxu0
    %v183 = vadd.f32 0.0, %v182
    %v184 = vpop.f32.mrb[0].mxu0
    %185 = vmatprep.mubr.f32.mxu0 0.0
    %186 = vmatmul.mubr.f32.gmra.mrb[0].mxu0 %v65
    %v187 = vpop.f32.mrb[0].mxu0
    %v188 = vadd.f32 0.0, %v187
    %v189 = vpop.f32.mrb[0].mxu0
    %190 = vmatprep.mubr.f32.mxu0 0.0
    %191 = vmatmul.mubr.f32.gmra.mrb[0].mxu0 %v66
    %v192 = vpop.f32.mrb[0].mxu0
    %v193 = vadd.f32 0.0, %v192
    %v194 = vpop.f32.mrb[0].mxu0
    %195 = vmatprep.mubr.f32.mxu0 0.0
    %196 = vmatmul.mubr.f32.gmra.mrb[0].mxu0 %v67
    %v197 = vpop.f32.mrb[0].mxu0
    %v198 = vadd.f32 0.0, %v197
    %v199 = vpop.f32.mrb[0].mxu0
    %200 = vmatprep.mubr.f32.mxu0 0.0
    %201 = vmatmul.mubr.f32.gmra.mrb[0].mxu0 %v68
    %v202 = vpop.f32.mrb[0].mxu0
    %v203 = vadd.f32 0.0, %v202
    %v204 = vpop.f32.mrb[0].mxu0
    %205 = vmatprep.mubr.f32.mxu0 0.0
    %206 = vmatmul.mubr.f32.gmra.mrb[0].mxu0 %v69
    %v207 = vpop.f32.mrb[0].mxu0
    %v208 = vadd.f32 0.0, %v207
    %v209 = vpop.f32.mrb[0].mxu0
    %210 = vmatprep.mubr.f32.mxu0 0.0
    %211 = vmatmul.mubr.f32.gmra.mrb[0].mxu0 %v70
    %v212 = vpop.f32.mrb[0].mxu0
    %v213 = vadd.f32 0.0, %v212
    %v214 = vpop.f32.mrb[0].mxu0
    %215 = vmatprep.mubr.f32.mxu0 0.0
    %216 = vmatmul.mubr.f32.gmra.mrb[0].mxu0 %v71
    %v217 = vpop.f32.mrb[0].mxu0
    %v218 = vadd.f32 0.0, %v217
    %v219 = vpop.f32.mrb[0].mxu0
    %220 = vmatprep.mubr.f32.mxu0 0.0
    %221 = vmatmul.mubr.f32.gmra.mrb[0].mxu0 %v72
    %v222 = vpop.f32.mrb[0].mxu0
    %v223 = vadd.f32 0.0, %v222
    %v224 = vpop.f32.mrb[0].mxu0
    %225 = vmatprep.mubr.f32.mxu0 0.0
    %226 = vmatmul.mubr.f32.gmra.mrb[0].mxu0 %v73
    %v227 = vpop.f32.mrb[0].mxu0
    %v228 = vadd.f32 0.0, %v227
    %v229 = vpop.f32.mrb[0].mxu0
    %230 = vmatprep.mubr.f32.mxu0 0.0
    %231 = vmatmul.mubr.f32.gmra.mrb[0].mxu0 %v74
    %v232 = vpop.f32.mrb[0].mxu0
    %v233 = vadd.f32 0.0, %v232
    %v234 = vpop.f32.mrb[0].mxu0
    %235 = vdwg.mxu0
    %236 = vxpose.xlu0.b32.start [1/16] %v158, 128
    %237 = vxpose.xlu0.b32.cont [2/16] %v163, 128
    %238 = vxpose.xlu0.b32.cont [3/16] %v168, 128
    %239 = vxpose.xlu0.b32.cont [4/16] %v173, 128
    %240 = vxpose.xlu0.b32.cont [5/16] %v178, 128
    %241 = vxpose.xlu0.b32.cont [6/16] %v183, 128
    %242 = vxpose.xlu0.b32.cont [7/16] %v188, 128
    %243 = vxpose.xlu0.b32.cont [8/16] %v193, 128
    %244 = vxpose.xlu0.b32.cont [9/16] %v198, 128
    %245 = vxpose.xlu0.b32.cont [10/16] %v203, 128
    %246 = vxpose.xlu0.b32.cont [11/16] %v208, 128
    %247 = vxpose.xlu0.b32.cont [12/16] %v213, 128
    %248 = vxpose.xlu0.b32.cont [13/16] %v218, 128
    %249 = vxpose.xlu0.b32.cont [14/16] %v223, 128
    %250 = vxpose.xlu0.b32.cont [15/16] %v228, 128
    %251 = vxpose.xlu0.b32.end [16/16] %v233, 128
    %v252 = vpop.trf.xlu0
    %v253 = vpop.trf.xlu0
    %v254 = vpop.trf.xlu0
    %v255 = vpop.trf.xlu0
    %v256 = vpop.trf.xlu0
    %v257 = vpop.trf.xlu0
    %v258 = vpop.trf.xlu0
    %v259 = vpop.trf.xlu0
    %v260 = vpop.trf.xlu0
    %v261 = vpop.trf.xlu0
    %v262 = vpop.trf.xlu0
    %v263 = vpop.trf.xlu0
    %v264 = vpop.trf.xlu0
    %v265 = vpop.trf.xlu0
    %v266 = vpop.trf.xlu0
    %v267 = vpop.trf.xlu0
    %268 = vst [vmem:[#allocation8] sm:$0xff] %v252
    %269 = vst [vmem:[#allocation8 + $0x8] sm:$0xff] %v253
    %270 = vst [vmem:[#allocation8 + $0x10] sm:$0xff] %v254
    %271 = vst [vmem:[#allocation8 + $0x18] sm:$0xff] %v255
    %272 = vst [vmem:[#allocation8 + $0x20] sm:$0xff] %v256
    %273 = vst [vmem:[#allocation8 + $0x28] sm:$0xff] %v257
    %274 = vst [vmem:[#allocation8 + $0x30] sm:$0xff] %v258
    %275 = vst [vmem:[#allocation8 + $0x38] sm:$0xff] %v259
    %276 = vst [vmem:[#allocation8 + $0x40] sm:$0xff] %v260
    %277 = vst [vmem:[#allocation8 + $0x48] sm:$0xff] %v261
    %278 = vst [vmem:[#allocation8 + $0x50] sm:$0xff] %v262
    %279 = vst [vmem:[#allocation8 + $0x58] sm:$0xff] %v263
    %280 = vst [vmem:[#allocation8 + $0x60] sm:$0xff] %v264
    %281 = vst [vmem:[#allocation8 + $0x68] sm:$0xff] %v265
    %282 = vst [vmem:[#allocation8 + $0x70] sm:$0xff] %v266
    %283 = vst [vmem:[#allocation8 + $0x78] sm:$0xff] %v267
    %v284 = vld [vmem:[#allocation7] sm:$0xff]
    %v285 = vld [vmem:[#allocation7 + $0x8] sm:$0xff]
    %v286 = vld [vmem:[#allocation7 + $0x10] sm:$0xff]
    %v287 = vld [vmem:[#allocation7 + $0x18] sm:$0xff]
    %v288 = vld [vmem:[#allocation7 + $0x20] sm:$0xff]
    %v289 = vld [vmem:[#allocation7 + $0x28] sm:$0xff]
    %v290 = vld [vmem:[#allocation7 + $0x30] sm:$0xff]
    %v291 = vld [vmem:[#allocation7 + $0x38] sm:$0xff]
    %v292 = vld [vmem:[#allocation7 + $0x40] sm:$0xff]
    %v293 = vld [vmem:[#allocation7 + $0x48] sm:$0xff]
    %v294 = vld [vmem:[#allocation7 + $0x50] sm:$0xff]
    %v295 = vld [vmem:[#allocation7 + $0x58] sm:$0xff]
    %v296 = vld [vmem:[#allocation7 + $0x60] sm:$0xff]
    %v297 = vld [vmem:[#allocation7 + $0x68] sm:$0xff]
    %v298 = vld [vmem:[#allocation7 + $0x70] sm:$0xff]
    %v299 = vld [vmem:[#allocation7 + $0x78] sm:$0xff]
    %300 = vmatprep.subr.mxu0 0.0
    %301 = vmatpush1.msra.mxu0 %v284
    %302 = vmatprep.subr.mxu0 0.0
    %303 = vmatpush1.msra.mxu0 %v285
    %304 = vmatprep.subr.mxu0 0.0
    %305 = vmatpush1.msra.mxu0 %v286
    %306 = vmatprep.subr.mxu0 0.0
    %307 = vmatpush1.msra.mxu0 %v287
    %308 = vmatprep.subr.mxu0 0.0
    %309 = vmatpush1.msra.mxu0 %v288
    %310 = vmatprep.subr.mxu0 0.0
    %311 = vmatpush1.msra.mxu0 %v289
    %312 = vmatprep.subr.mxu0 0.0
    %313 = vmatpush1.msra.mxu0 %v290
    %314 = vmatprep.subr.mxu0 0.0
    %315 = vmatpush1.msra.mxu0 %v291
    %316 = vmatprep.subr.mxu0 0.0
    %317 = vmatpush1.msra.mxu0 %v292
    %318 = vmatprep.subr.mxu0 0.0
    %319 = vmatpush1.msra.mxu0 %v293
    %320 = vmatprep.subr.mxu0 0.0
    %321 = vmatpush1.msra.mxu0 %v294
    %322 = vmatprep.subr.mxu0 0.0
    %323 = vmatpush1.msra.mxu0 %v295
    %324 = vmatprep.subr.mxu0 0.0
    %325 = vmatpush1.msra.mxu0 %v296
    %326 = vmatprep.subr.mxu0 0.0
    %327 = vmatpush1.msra.mxu0 %v297
    %328 = vmatprep.subr.mxu0 0.0
    %329 = vmatpush1.msra.mxu0 %v298
    %330 = vmatprep.subr.mxu0 0.0
    %331 = vmatpush1.msra.mxu0 %v299
    %332 = vmatprep.subr.mxu0 0.0
    %333 = vmatpush1.msra.mxu0 0.0
    %334 = vmatprep.subr.mxu0 0.0
    %335 = vmatpush1.msra.mxu0 0.0
    %336 = vmatprep.subr.mxu0 0.0
    %337 = vmatpush1.msra.mxu0 0.0
    %338 = vmatprep.subr.mxu0 0.0
    %339 = vmatpush1.msra.mxu0 0.0
    %340 = vmatprep.subr.mxu0 0.0
    %341 = vmatpush1.msra.mxu0 0.0
    %342 = vmatprep.subr.mxu0 0.0
    %343 = vmatpush1.msra.mxu0 0.0
    %344 = vmatprep.subr.mxu0 0.0
    %345 = vmatpush1.msra.mxu0 0.0
    %346 = vmatprep.subr.mxu0 0.0
    %347 = vmatpush1.msra.mxu0 0.0
    %348 = vmatprep.subr.mxu0 0.0
    %349 = vmatpush1.msra.mxu0 0.0
    %350 = vmatprep.subr.mxu0 0.0
    %351 = vmatpush1.msra.mxu0 0.0
    %352 = vmatprep.subr.mxu0 0.0
    %353 = vmatpush1.msra.mxu0 0.0
    %354 = vmatprep.subr.mxu0 0.0
    %355 = vmatpush1.msra.mxu0 0.0
    %356 = vmatprep.subr.mxu0 0.0
    %357 = vmatpush1.msra.mxu0 0.0
    %358 = vmatprep.subr.mxu0 0.0
    %359 = vmatpush1.msra.mxu0 0.0
    %360 = vmatprep.subr.mxu0 0.0
    %361 = vmatpush1.msra.mxu0 0.0
    %362 = vmatprep.subr.mxu0 0.0
    %363 = vmatpush1.msra.mxu0 0.0
    %364 = vmatprep.mubr.f32.mxu0 0.0
    %365 = vmatmul.mubr.f32.gmra.mrb[0].mxu0 %v59
    %v366 = vpop.f32.mrb[0].mxu0
    %v367 = vadd.f32 0.0, %v366
    %v368 = vpop.f32.mrb[0].mxu0
    %369 = vmatprep.mubr.f32.mxu0 0.0
    %370 = vmatmul.mubr.f32.gmra.mrb[0].mxu0 %v60
    %v371 = vpop.f32.mrb[0].mxu0
    %v372 = vadd.f32 0.0, %v371
    %v373 = vpop.f32.mrb[0].mxu0
    %374 = vmatprep.mubr.f32.mxu0 0.0
    %375 = vmatmul.mubr.f32.gmra.mrb[0].mxu0 %v61
    %v376 = vpop.f32.mrb[0].mxu0
    %v377 = vadd.f32 0.0, %v376
    %v378 = vpop.f32.mrb[0].mxu0
    %379 = vmatprep.mubr.f32.mxu0 0.0
    %380 = vmatmul.mubr.f32.gmra.mrb[0].mxu0 %v62
    %v381 = vpop.f32.mrb[0].mxu0
    %v382 = vadd.f32 0.0, %v381
    %v383 = vpop.f32.mrb[0].mxu0
    %384 = vmatprep.mubr.f32.mxu0 0.0
    %385 = vmatmul.mubr.f32.gmra.mrb[0].mxu0 %v63
    %v386 = vpop.f32.mrb[0].mxu0
    %v387 = vadd.f32 0.0, %v386
    %v388 = vpop.f32.mrb[0].mxu0
    %389 = vmatprep.mubr.f32.mxu0 0.0
    %390 = vmatmul.mubr.f32.gmra.mrb[0].mxu0 %v64
    %v391 = vpop.f32.mrb[0].mxu0
    %v392 = vadd.f32 0.0, %v391
    %v393 = vpop.f32.mrb[0].mxu0
    %394 = vmatprep.mubr.f32.mxu0 0.0
    %395 = vmatmul.mubr.f32.gmra.mrb[0].mxu0 %v65
    %v396 = vpop.f32.mrb[0].mxu0
    %v397 = vadd.f32 0.0, %v396
    %v398 = vpop.f32.mrb[0].mxu0
    %399 = vmatprep.mubr.f32.mxu0 0.0
    %400 = vmatmul.mubr.f32.gmra.mrb[0].mxu0 %v66
    %v401 = vpop.f32.mrb[0].mxu0
    %v402 = vadd.f32 0.0, %v401
    %v403 = vpop.f32.mrb[0].mxu0
    %404 = vmatprep.mubr.f32.mxu0 0.0
    %405 = vmatmul.mubr.f32.gmra.mrb[0].mxu0 %v67
    %v406 = vpop.f32.mrb[0].mxu0
    %v407 = vadd.f32 0.0, %v406
    %v408 = vpop.f32.mrb[0].mxu0
    %409 = vmatprep.mubr.f32.mxu0 0.0
    %410 = vmatmul.mubr.f32.gmra.mrb[0].mxu0 %v68
    %v411 = vpop.f32.mrb[0].mxu0
    %v412 = vadd.f32 0.0, %v411
    %v413 = vpop.f32.mrb[0].mxu0
    %414 = vmatprep.mubr.f32.mxu0 0.0
    %415 = vmatmul.mubr.f32.gmra.mrb[0].mxu0 %v69
    %v416 = vpop.f32.mrb[0].mxu0
    %v417 = vadd.f32 0.0, %v416
    %v418 = vpop.f32.mrb[0].mxu0
    %419 = vmatprep.mubr.f32.mxu0 0.0
    %420 = vmatmul.mubr.f32.gmra.mrb[0].mxu0 %v70
    %v421 = vpop.f32.mrb[0].mxu0
    %v422 = vadd.f32 0.0, %v421
    %v423 = vpop.f32.mrb[0].mxu0
    %424 = vmatprep.mubr.f32.mxu0 0.0
    %425 = vmatmul.mubr.f32.gmra.mrb[0].mxu0 %v71
    %v426 = vpop.f32.mrb[0].mxu0
    %v427 = vadd.f32 0.0, %v426
    %v428 = vpop.f32.mrb[0].mxu0
    %429 = vmatprep.mubr.f32.mxu0 0.0
    %430 = vmatmul.mubr.f32.gmra.mrb[0].mxu0 %v72
    %v431 = vpop.f32.mrb[0].mxu0
    %v432 = vadd.f32 0.0, %v431
    %v433 = vpop.f32.mrb[0].mxu0
    %434 = vmatprep.mubr.f32.mxu0 0.0
    %435 = vmatmul.mubr.f32.gmra.mrb[0].mxu0 %v73
    %v436 = vpop.f32.mrb[0].mxu0
    %v437 = vadd.f32 0.0, %v436
    %v438 = vpop.f32.mrb[0].mxu0
    %439 = vmatprep.mubr.f32.mxu0 0.0
    %440 = vmatmul.mubr.f32.gmra.mrb[0].mxu0 %v74
    %v441 = vpop.f32.mrb[0].mxu0
    %v442 = vadd.f32 0.0, %v441
    %v443 = vpop.f32.mrb[0].mxu0
    %444 = vdwg.mxu0
    %445 = vst [vmem:[#allocation9] sm:$0xff] %v367
    %446 = vst [vmem:[#allocation9 + $0x8] sm:$0xff] %v372
    %447 = vst [vmem:[#allocation9 + $0x10] sm:$0xff] %v377
    %448 = vst [vmem:[#allocation9 + $0x18] sm:$0xff] %v382
    %449 = vst [vmem:[#allocation9 + $0x20] sm:$0xff] %v387
    %450 = vst [vmem:[#allocation9 + $0x28] sm:$0xff] %v392
    %451 = vst [vmem:[#allocation9 + $0x30] sm:$0xff] %v397
    %452 = vst [vmem:[#allocation9 + $0x38] sm:$0xff] %v402
    %453 = vst [vmem:[#allocation9 + $0x40] sm:$0xff] %v407
    %454 = vst [vmem:[#allocation9 + $0x48] sm:$0xff] %v412
    %455 = vst [vmem:[#allocation9 + $0x50] sm:$0xff] %v417
    %456 = vst [vmem:[#allocation9 + $0x58] sm:$0xff] %v422
    %457 = vst [vmem:[#allocation9 + $0x60] sm:$0xff] %v427
    %458 = vst [vmem:[#allocation9 + $0x68] sm:$0xff] %v432
    %459 = vst [vmem:[#allocation9 + $0x70] sm:$0xff] %v437
    %460 = vst [vmem:[#allocation9 + $0x78] sm:$0xff] %v442
    // Predicated region
    $region26: #{tpu_custom_call.1} parent=1 // pred_check
      _
    $region27: #{tpu_custom_call.1} parent=1 // pred_check_branch
      %462 = sbr.rel (0) target = $region29
    $region28: #{tpu_custom_call.1} parent=1 // pred_region
      %s464 = ssub.s32 2048, 2048
      %465 = vsyncadd [#allocation4], %s464
      %s466 = sshll.u32 [#allocation8], 4
      %s467 = int_to_ptr.vmem [resolvable:$true] %s466
      %472 = dma.vmem_to_hbm [thread:$0]  %s467, 2048, %s3, [#allocation4], 128, 128, 8
    $region29: #{tpu_custom_call.1} parent=1 // pred_fallthru
      _
    // Predicated region
    $region30: #{tpu_custom_call.1} parent=1 // pred_check
      _
    $region31: #{tpu_custom_call.1} parent=1 // pred_check_branch
      %474 = sbr.rel (0) target = $region33
    $region32: #{tpu_custom_call.1} parent=1 // pred_region
      %s476 = ssub.s32 2048, 2048
      %477 = vsyncadd [#allocation10], %s476
      %s478 = sshll.u32 [#allocation9], 4
      %s479 = int_to_ptr.vmem [resolvable:$true] %s478
      %484 = dma.vmem_to_hbm [thread:$0]  %s479, 2048, %s4, [#allocation10], 128, 128, 8
    $region33: #{tpu_custom_call.1} parent=1 // pred_fallthru
      _
    // Predicated region
    $region34: #{tpu_custom_call.1} parent=1 // pred_check
      _
    $region35: #{tpu_custom_call.1} parent=1 // pred_check_branch
      %486 = sbr.rel (0) target = $region37
    $region36: #{tpu_custom_call.1} parent=1 // pred_region
      %487 = dma.done [#allocation4], 2048
    $region37: #{tpu_custom_call.1} parent=1 // pred_fallthru
      _
    // Predicated region
    $region38: #{tpu_custom_call.1} parent=1 // pred_check
      _
    $region39: #{tpu_custom_call.1} parent=1 // pred_check_branch
      %489 = sbr.rel (0) target = $region41
    $region40: #{tpu_custom_call.1} parent=1 // pred_region
      %490 = dma.done [#allocation10], 2048
    $region41: #{tpu_custom_call.1} parent=1 // pred_fallthru
      _
    %491 = vsyncpa [#allocation3], 1
    %492 = vsyncpa [#allocation6], 1
    %493 = vsyncpa [#allocation4], 1
    %494 = vsyncpa [#allocation10], 1

</llo_original>
